<compile_context>
chip_gen: v5e
topology: v5e:2x2
jax: 0.10.0
libtpu: 0.0.40
codegen_flags: <defaults>
</compile_context>

<pallas_src>
import jax
import jax.numpy as jnp
from jax import lax
from jax.experimental import pallas as pl
from jax.experimental.pallas import tpu as pltpu

_VMEM_LIMIT = 32 * 1024 * 1024   # raise the scoped-VMEM default (16 MiB on v5e)


# --------------------------------------------------------------------------
# Pallas kernel 1: one BiLSTM layer, both directions fused into one loop.
# --------------------------------------------------------------------------
def _bilstm_layer_kernel(x_ref, wih_f_ref, wih_b_ref, bias_f_ref, bias_b_ref,
                         whh_f_ref, whh_b_ref,
                         h0f_ref, c0f_ref, h0b_ref, c0b_ref,
                         out_ref, xgf_sc, xgb_sc):
    B, T, _ = out_ref.shape
    H = whh_f_ref.shape[0]
    G = 4 * H

    # ---- Hoisted, time-independent input projections: one big MXU matmul per
    #      direction (M = B*T rows), written straight into the gate scratch.
    x2d = x_ref[...]                                              # (B*T, Din)
    xgf_sc[...] = (jnp.dot(x2d, wih_f_ref[...],
                           preferred_element_type=jnp.float32)
                   + bias_f_ref[...]).reshape(B, T, G)
    xgb_sc[...] = (jnp.dot(x2d, wih_b_ref[...],
                           preferred_element_type=jnp.float32)
                   + bias_b_ref[...]).reshape(B, T, G)

    whh_f = whh_f_ref[...]                                        # keep resident
    whh_b = whh_b_ref[...]

    def gate_math(g, c_prev):
        i = jax.nn.sigmoid(g[:, 0 * H:1 * H])
        f = jax.nn.sigmoid(g[:, 1 * H:2 * H])
        cand = jnp.tanh(g[:, 2 * H:3 * H])
        o = jax.nn.sigmoid(g[:, 3 * H:4 * H])
        c = f * c_prev + i * cand
        h = o * jnp.tanh(c)
        return h, c

    # ---- Single fused recurrence: fwd consumes timestep t, bwd consumes
    #      T-1-t.  The two directions are independent, so their small matmuls
    #      and sigmoid/tanh chains interleave on the serial critical path.
    def body(t, carry):
        hf, cf, hb, cb = carry
        tb = T - 1 - t
        gf = (xgf_sc[:, pl.ds(t, 1), :].reshape(B, G)
              + jnp.dot(hf, whh_f, preferred_element_type=jnp.float32))
        gb = (xgb_sc[:, pl.ds(tb, 1), :].reshape(B, G)
              + jnp.dot(hb, whh_b, preferred_element_type=jnp.float32))
        hf, cf = gate_math(gf, cf)
        hb, cb = gate_math(gb, cb)
        # Store directly into the output block (PyTorch [fwd ; bwd] order).
        out_ref[:, pl.ds(t, 1), 0:H] = hf.reshape(B, 1, H)
        out_ref[:, pl.ds(tb, 1), H:2 * H] = hb.reshape(B, 1, H)
        return hf, cf, hb, cb

    lax.fori_loop(0, T, body,
                  (h0f_ref[...], c0f_ref[...], h0b_ref[...], c0b_ref[...]))


def bilstm_layer(x, p, h0f, c0f, h0b, c0b):
    """x: (B, T, Din) batch-major.  Returns (B, T, 2H) = [fwd ; bwd]."""
    B, T, Din = x.shape
    H = p["whh_f"].shape[0]
    x2d = x.reshape(B * T, Din)       # row-major flatten, free on the XLA side
    return pl.pallas_call(
        _bilstm_layer_kernel,
        out_shape=jax.ShapeDtypeStruct((B, T, 2 * H), jnp.float32),
        grid_spec=pltpu.PrefetchScalarGridSpec(
            num_scalar_prefetch=0,
            grid=(1,),   # grid-invariant blocks: no re-DMA across steps
            in_specs=[
                pl.BlockSpec((B * T, Din), lambda i: (0, 0)),
                pl.BlockSpec((Din, 4 * H), lambda i: (0, 0)),
                pl.BlockSpec((Din, 4 * H), lambda i: (0, 0)),
                pl.BlockSpec((1, 4 * H), lambda i: (0, 0)),
                pl.BlockSpec((1, 4 * H), lambda i: (0, 0)),
                pl.BlockSpec((H, 4 * H), lambda i: (0, 0)),
                pl.BlockSpec((H, 4 * H), lambda i: (0, 0)),
                pl.BlockSpec((B, H), lambda i: (0, 0)),
                pl.BlockSpec((B, H), lambda i: (0, 0)),
                pl.BlockSpec((B, H), lambda i: (0, 0)),
                pl.BlockSpec((B, H), lambda i: (0, 0)),
            ],
            out_specs=pl.BlockSpec((B, T, 2 * H), lambda i: (0, 0, 0)),
            scratch_shapes=[
                pltpu.VMEM((B, T, 4 * H), jnp.float32),   # fwd input gates
                pltpu.VMEM((B, T, 4 * H), jnp.float32),   # bwd input gates
            ],
        ),
        compiler_params=pltpu.CompilerParams(
            dimension_semantics=("arbitrary",),
            vmem_limit_bytes=_VMEM_LIMIT),
    )(x2d, p["wih_f"], p["wih_b"], p["bias_f"], p["bias_b"],
      p["whh_f"], p["whh_b"], h0f, c0f, h0b, c0b)


# --------------------------------------------------------------------------
# Pallas kernel 2: batch-tiled self-attention head with the pad-mask fused in.
#   outh   = lstm_out * mask[:, :, None]
#   hbar   = tanh(outh @ ws1^T)          (b_blk*T, A)
#   scores = hbar @ ws2^T                -> (b_blk, hops, T)
#   alphas = softmax over T
#   out    = alphas @ outh               (b_blk, hops, 2H)
# --------------------------------------------------------------------------
def _attn_kernel(x_ref, mask_ref, ws1t_ref, ws2t_ref,
                 out_ref, alphas_ref, outh_ref):
    Bb, T, D2 = x_ref.shape
    hops = ws2t_ref.shape[1]

    # Fused pad-mask multiply; outh written once to its VMEM output block.
    outh_ref[...] = x_ref[...] * mask_ref[...][:, :, None]

    flat = outh_ref[...].reshape(Bb * T, D2)
    hbar = jnp.tanh(jnp.dot(flat, ws1t_ref[...],
                            preferred_element_type=jnp.float32))     # (Bb*T, A)
    scores = jnp.dot(hbar, ws2t_ref[...],
                     preferred_element_type=jnp.float32)             # (Bb*T, hops)
    scores = jnp.transpose(scores.reshape(Bb, T, hops), (0, 2, 1))   # (Bb,hops,T)

    m = jnp.max(scores, axis=-1, keepdims=True)
    e = jnp.exp(scores - m)
    denom = jnp.sum(e, axis=-1, keepdims=True)
    alphas = e * pl.reciprocal(denom, approx=True)                   # (Bb,hops,T)
    alphas_ref[...] = alphas

    # Re-read outh from VMEM (releases the activation live-range held across
    # the ws1/ws2/softmax region).
    out_ref[...] = lax.dot_general(
        alphas, outh_ref[...], (((2,), (1,)), ((0,), (0,))),
        preferred_element_type=jnp.float32)                          # (Bb,hops,D2)


def _pick_batch_block(B, T, D2, hops, budget_bytes):
    """Largest batch block (B itself or a multiple of 8 dividing B) whose
    double-buffered blocks fit the VMEM budget."""
    per_row = 2 * 4 * (2 * T * D2 + hops * D2 + hops * T + T)
    cap = max(1, budget_bytes // max(per_row, 1))
    if B <= cap:
        return B
    best = None
    for cand in range(8, B, 8):
        if B % cand == 0 and cand <= cap:
            best = cand
    return best if best is not None else B


def self_attention(x, mask, ws1_t, ws2_t, *, vmem_budget=8 << 20):
    B, T, D2 = x.shape
    A = ws1_t.shape[1]
    hops = ws2_t.shape[1]
    b_blk = _pick_batch_block(B, T, D2, hops, vmem_budget)
    mask_f = mask.astype(jnp.float32)                   # lane-dense (B, T)
    out, alphas, outh = pl.pallas_call(
        _attn_kernel,
        out_shape=(jax.ShapeDtypeStruct((B, hops, D2), jnp.float32),
                   jax.ShapeDtypeStruct((B, hops, T), jnp.float32),
                   jax.ShapeDtypeStruct((B, T, D2), jnp.float32)),
        grid_spec=pltpu.PrefetchScalarGridSpec(
            num_scalar_prefetch=0,
            grid=(B // b_blk,),
            in_specs=[
                pl.BlockSpec((b_blk, T, D2), lambda b: (b, 0, 0)),
                pl.BlockSpec((b_blk, T), lambda b: (b, 0)),
                pl.BlockSpec((D2, A), lambda b: (0, 0)),
                pl.BlockSpec((A, hops), lambda b: (0, 0)),
            ],
            out_specs=[
                pl.BlockSpec((b_blk, hops, D2), lambda b: (b, 0, 0)),
                pl.BlockSpec((b_blk, hops, T), lambda b: (b, 0, 0)),
                pl.BlockSpec((b_blk, T, D2), lambda b: (b, 0, 0)),
            ],
        ),
        compiler_params=pltpu.CompilerParams(
            dimension_semantics=("parallel",),
            vmem_limit_bytes=_VMEM_LIMIT),
    )(x, mask_f, ws1_t, ws2_t)
    return out, alphas, outh


# --------------------------------------------------------------------------
# Module glue: embedding gather, per-layer fused-BiLSTM kernel, attention.
# Activations stay batch-major (B, T, .) end-to-end: no transposes / concats.
# --------------------------------------------------------------------------
def self_attentive_encoder_forward(params, cfg, sents, mask, init_hc):
    n_layers = cfg["n_layers"]
    h0_all, c0_all = init_hc                 # (n_layers*2, B, H) each

    x = params["embedding"][sents]           # (B, T, E)   (dropout == identity)
    for layer in range(n_layers):
        p = params["lstm"][layer]
        x = bilstm_layer(x, p,
                         h0_all[2 * layer + 0], c0_all[2 * layer + 0],
                         h0_all[2 * layer + 1], c0_all[2 * layer + 1])
    out, alphas, outh = self_attention(x, mask, params["ws1_t"], params["ws2_t"])
    return out, alphas, outh


# --------------------------------------------------------------------------
# Pure-JAX reference (correctness check).
# --------------------------------------------------------------------------
def _lstm_dir_ref(x_bte, wih_t, whh_t, bias, h0, c0, reverse):
    def step(carry, x_t):
        h, c = carry
        gates = x_t @ wih_t + h @ whh_t + bias
        i, f, g, o = jnp.split(gates, 4, axis=-1)
        i, f, o = jax.nn.sigmoid(i), jax.nn.sigmoid(f), jax.nn.sigmoid(o)
        g = jnp.tanh(g)
        c = f * c + i * g
        h = o * jnp.tanh(c)
        return (h, c), h

    xs = jnp.transpose(x_bte, (1, 0, 2))
    if reverse:
        xs = xs[::-1]
    _, hs = lax.scan(step, (h0, c0), xs)
    if reverse:
        hs = hs[::-1]
    return jnp.transpose(hs, (1, 0, 2))


def reference_forward(params, cfg, sents, mask, init_hc):
    n_layers = cfg["n_layers"]
    h0_all, c0_all = init_hc
    x = params["embedding"][sents]
    for layer in range(n_layers):
        p = params["lstm"][layer]
        fwd = _lstm_dir_ref(x, p["wih_f"], p["whh_f"], p["bias_f"][0],
                            h0_all[2 * layer], c0_all[2 * layer], False)
        bwd = _lstm_dir_ref(x, p["wih_b"], p["whh_b"], p["bias_b"][0],
                            h0_all[2 * layer + 1], c0_all[2 * layer + 1], True)
        x = jnp.concatenate([fwd, bwd], axis=-1)
    outh = x * mask[:, :, None]

    B, T, D2 = outh.shape
    hops = params["ws2"].shape[0]
    flat = outh.reshape(-1, D2)
    hbar = jnp.tanh(flat @ params["ws1"].T)
    al = (hbar @ params["ws2"].T).reshape(B, T, hops)
    al = jnp.transpose(al, (0, 2, 1)).reshape(-1, T)
    al = jax.nn.softmax(al, axis=-1).reshape(B, hops, T)
    out = jnp.einsum("bht,btd->bhd", al, outh)
    return out, al, outh


# --------------------------------------------------------------------------
def make_params(key, cfg):
    E, H = cfg["embed_dim"], cfg["hidden_dim"]
    A, hops = cfg["attention_unit"], cfg["attention_hops"]
    n_tokens, n_layers = cfg["n_tokens"], cfg["n_layers"]
    ks = iter(jax.random.split(key, 64))

    def uni(shape, scale):
        return jax.random.uniform(next(ks), shape, jnp.float32, -scale, scale)

    params = {}
    emb = uni((n_tokens, E), 0.1)
    params["embedding"] = emb.at[0].set(0.0)            # <pad> row zeroed (idx 0)
    params["ws1"] = uni((A, 2 * H), 0.1)                # nn.Linear(2H -> A), no bias
    params["ws2"] = uni((hops, A), 0.1)                 # nn.Linear(A -> hops), no bias
    params["ws1_t"] = params["ws1"].T                   # pre-transposed once
    params["ws2_t"] = params["ws2"].T

    params["lstm"] = {}
    k = 1.0 / (H ** 0.5)
    for layer in range(n_layers):
        in_dim = E if layer == 0 else 2 * H
        wih_t, whh_t, bias = [], [], []
        for _d in range(2):                              # d=0 fwd, d=1 bwd
            w_ih = uni((4 * H, in_dim), k)
            w_hh = uni((4 * H, H), k)
            b_ih = uni((4 * H,), k)
            b_hh = uni((4 * H,), k)
            wih_t.append(w_ih.T)                         # (in_dim, 4H)
            whh_t.append(w_hh.T)                         # (H, 4H)
            bias.append((b_ih + b_hh)[None, :])          # (1, 4H)
        params["lstm"][layer] = {
            "wih_f": wih_t[0], "wih_b": wih_t[1],
            "bias_f": bias[0], "bias_b": bias[1],
            "whh_f": whh_t[0], "whh_b": whh_t[1],
        }
    return params


if __name__ == "__main__":
    cfg = dict(n_tokens=50, embed_dim=32, hidden_dim=16, n_layers=2,
               attention_unit=16, attention_hops=4)
    B, T = 2, 8
    H, n_layers = cfg["hidden_dim"], cfg["n_layers"]

    key = jax.random.PRNGKey(0)
    kp, ks, km = jax.random.split(key, 3)
    params = make_params(kp, cfg)

    sents = jax.random.randint(ks, (B, T), 1, cfg["n_tokens"], dtype=jnp.int32)
    lengths = jnp.array([T, T - 3], dtype=jnp.int32)
    mask = (jnp.arange(T)[None, :] < lengths[:, None]).astype(jnp.float32)
    init_hc = (jnp.zeros((n_layers * 2, B, H), jnp.float32),
               jnp.zeros((n_layers * 2, B, H), jnp.float32))

    out, alphas, outh = self_attentive_encoder_forward(
        params, cfg, sents, mask, init_hc)
    jax.block_until_ready((out, alphas, outh))

    out_ref, alphas_ref, outh_ref = reference_forward(
        params, cfg, sents, mask, init_hc)
    jax.block_until_ready((out_ref, alphas_ref, outh_ref))

    assert out.shape == (B, cfg["attention_hops"], 2 * H)
    assert alphas.shape == (B, cfg["attention_hops"], T)
    assert jnp.allclose(outh, outh_ref, rtol=2e-3, atol=2e-3)
    assert jnp.allclose(alphas, alphas_ref, rtol=2e-3, atol=2e-3)
    assert jnp.allclose(out, out_ref, rtol=2e-3, atol=2e-3)

    print("KERNEL_OK")
</pallas_src>

<mosaic_0001>
module attributes {stable_mosaic.version = 11 : i64} {
  func.func @_bilstm_layer_kernel(%arg0: i32, %arg1: memref<16x32xf32, #tpu.memory_space<vmem>>, %arg2: memref<32x64xf32, #tpu.memory_space<vmem>>, %arg3: memref<32x64xf32, #tpu.memory_space<vmem>>, %arg4: memref<1x64xf32, #tpu.memory_space<vmem>>, %arg5: memref<1x64xf32, #tpu.memory_space<vmem>>, %arg6: memref<16x64xf32, #tpu.memory_space<vmem>>, %arg7: memref<16x64xf32, #tpu.memory_space<vmem>>, %arg8: memref<2x16xf32, #tpu.memory_space<vmem>>, %arg9: memref<2x16xf32, #tpu.memory_space<vmem>>, %arg10: memref<2x16xf32, #tpu.memory_space<vmem>>, %arg11: memref<2x16xf32, #tpu.memory_space<vmem>>, %arg12: memref<2x8x32xf32, #tpu.memory_space<vmem>>, %arg13: memref<2x8x64xf32, #tpu.memory_space<vmem>>, %arg14: memref<2x8x64xf32, #tpu.memory_space<vmem>>) attributes {dimension_semantics = [#tpu.dimension_semantics<arbitrary>], iteration_bounds = array<i64: 1>, scalar_prefetch = 0 : i64, scratch_operands = 2 : i64, tpu.core_type = #tpu.core_type<tc>, window_params = [{pipeline_mode = #tpu.pipeline_mode<synchronous>, transform_indices = @transform_0, window_bounds = array<i64: 16, 32>}, {pipeline_mode = #tpu.pipeline_mode<synchronous>, transform_indices = @transform_1, window_bounds = array<i64: 32, 64>}, {pipeline_mode = #tpu.pipeline_mode<synchronous>, transform_indices = @transform_2, window_bounds = array<i64: 32, 64>}, {pipeline_mode = #tpu.pipeline_mode<synchronous>, transform_indices = @transform_3, window_bounds = array<i64: 1, 64>}, {pipeline_mode = #tpu.pipeline_mode<synchronous>, transform_indices = @transform_4, window_bounds = array<i64: 1, 64>}, {pipeline_mode = #tpu.pipeline_mode<synchronous>, transform_indices = @transform_5, window_bounds = array<i64: 16, 64>}, {pipeline_mode = #tpu.pipeline_mode<synchronous>, transform_indices = @transform_6, window_bounds = array<i64: 16, 64>}, {pipeline_mode = #tpu.pipeline_mode<synchronous>, transform_indices = @transform_7, window_bounds = array<i64: 2, 16>}, {pipeline_mode = #tpu.pipeline_mode<synchronous>, transform_indices = @transform_8, window_bounds = array<i64: 2, 16>}, {pipeline_mode = #tpu.pipeline_mode<synchronous>, transform_indices = @transform_9, window_bounds = array<i64: 2, 16>}, {pipeline_mode = #tpu.pipeline_mode<synchronous>, transform_indices = @transform_10, window_bounds = array<i64: 2, 16>}, {pipeline_mode = #tpu.pipeline_mode<synchronous>, transform_indices = @transform_11, window_bounds = array<i64: 2, 8, 32>}]} {
    %c0 = arith.constant 0 : index
    %c0_0 = arith.constant 0 : index
    %0 = vector.load %arg1[%c0, %c0_0] : memref<16x32xf32, #tpu.memory_space<vmem>>, vector<16x32xf32>
    %c0_1 = arith.constant 0 : index
    %c0_2 = arith.constant 0 : index
    %1 = vector.load %arg2[%c0_1, %c0_2] : memref<32x64xf32, #tpu.memory_space<vmem>>, vector<32x64xf32>
    %cst = arith.constant dense<0.000000e+00> : vector<16x64xf32>
    %2 = tpu.matmul %0, %1, %cst {dimension_numbers = #tpu.dot_dimension_numbers<[1], [0], [0], [1], [0, 0, 1, 1], [], []>} : vector<16x32xf32>, vector<32x64xf32>, vector<16x64xf32> -> vector<16x64xf32>
    %c0_3 = arith.constant 0 : index
    %c0_4 = arith.constant 0 : index
    %3 = vector.load %arg4[%c0_3, %c0_4] : memref<1x64xf32, #tpu.memory_space<vmem>>, vector<1x64xf32>
    %4 = vector.broadcast %3 : vector<1x64xf32> to vector<16x64xf32>
    %5 = arith.addf %2, %4 : vector<16x64xf32>
    %6 = vector.shape_cast %5 : vector<16x64xf32> to vector<2x8x64xf32>
    %c0_5 = arith.constant 0 : index
    %c0_6 = arith.constant 0 : index
    %c0_7 = arith.constant 0 : index
    %7 = vector.load %arg13[%c0_5, %c0_6, %c0_7] : memref<2x8x64xf32, #tpu.memory_space<vmem>>, vector<2x8x64xf32>
    tpu.vector_store %arg13[%c0_5, %c0_6, %c0_7], %6 {strides = array<i32>} : memref<2x8x64xf32, #tpu.memory_space<vmem>>, vector<2x8x64xf32>,
    %c0_8 = arith.constant 0 : index
    %c0_9 = arith.constant 0 : index
    %8 = vector.load %arg3[%c0_8, %c0_9] : memref<32x64xf32, #tpu.memory_space<vmem>>, vector<32x64xf32>
    %cst_10 = arith.constant dense<0.000000e+00> : vector<16x64xf32>
    %9 = tpu.matmul %0, %8, %cst_10 {dimension_numbers = #tpu.dot_dimension_numbers<[1], [0], [0], [1], [0, 0, 1, 1], [], []>} : vector<16x32xf32>, vector<32x64xf32>, vector<16x64xf32> -> vector<16x64xf32>
    %c0_11 = arith.constant 0 : index
    %c0_12 = arith.constant 0 : index
    %10 = vector.load %arg5[%c0_11, %c0_12] : memref<1x64xf32, #tpu.memory_space<vmem>>, vector<1x64xf32>
    %11 = vector.broadcast %10 : vector<1x64xf32> to vector<16x64xf32>
    %12 = arith.addf %9, %11 : vector<16x64xf32>
    %13 = vector.shape_cast %12 : vector<16x64xf32> to vector<2x8x64xf32>
    %c0_13 = arith.constant 0 : index
    %c0_14 = arith.constant 0 : index
    %c0_15 = arith.constant 0 : index
    %14 = vector.load %arg14[%c0_13, %c0_14, %c0_15] : memref<2x8x64xf32, #tpu.memory_space<vmem>>, vector<2x8x64xf32>
    tpu.vector_store %arg14[%c0_13, %c0_14, %c0_15], %13 {strides = array<i32>} : memref<2x8x64xf32, #tpu.memory_space<vmem>>, vector<2x8x64xf32>,
    %c0_16 = arith.constant 0 : index
    %c0_17 = arith.constant 0 : index
    %15 = vector.load %arg6[%c0_16, %c0_17] : memref<16x64xf32, #tpu.memory_space<vmem>>, vector<16x64xf32>
    %c0_18 = arith.constant 0 : index
    %c0_19 = arith.constant 0 : index
    %16 = vector.load %arg7[%c0_18, %c0_19] : memref<16x64xf32, #tpu.memory_space<vmem>>, vector<16x64xf32>
    %c0_20 = arith.constant 0 : index
    %c0_21 = arith.constant 0 : index
    %17 = vector.load %arg8[%c0_20, %c0_21] : memref<2x16xf32, #tpu.memory_space<vmem>>, vector<2x16xf32>
    %c0_22 = arith.constant 0 : index
    %c0_23 = arith.constant 0 : index
    %18 = vector.load %arg9[%c0_22, %c0_23] : memref<2x16xf32, #tpu.memory_space<vmem>>, vector<2x16xf32>
    %c0_24 = arith.constant 0 : index
    %c0_25 = arith.constant 0 : index
    %19 = vector.load %arg10[%c0_24, %c0_25] : memref<2x16xf32, #tpu.memory_space<vmem>>, vector<2x16xf32>
    %c0_26 = arith.constant 0 : index
    %c0_27 = arith.constant 0 : index
    %20 = vector.load %arg11[%c0_26, %c0_27] : memref<2x16xf32, #tpu.memory_space<vmem>>, vector<2x16xf32>
    %c0_i32 = arith.constant 0 : i32
    %c8_i32 = arith.constant 8 : i32
    %21 = arith.addi %c0_i32, %c8_i32 : i32
    %c1_i32 = arith.constant 1 : i32
    %22:4 = scf.for %arg15 = %c0_i32 to %21 step %c1_i32 iter_args(%arg16 = %17, %arg17 = %18, %arg18 = %19, %arg19 = %20) -> (vector<2x16xf32>, vector<2x16xf32>, vector<2x16xf32>, vector<2x16xf32>)  : i32 {
      %c7_i32 = arith.constant 7 : i32
      %23 = arith.subi %c7_i32, %arg15 : i32
      %c0_29 = arith.constant 0 : index
      %24 = arith.index_cast %arg15 : i32 to index
      %c0_30 = arith.constant 0 : index
      %25 = vector.load %arg13[%c0_29, %24, %c0_30] : memref<2x8x64xf32, #tpu.memory_space<vmem>>, vector<2x1x64xf32>
      %26 = vector.shape_cast %25 : vector<2x1x64xf32> to vector<2x64xf32>
      %cst_31 = arith.constant dense<0.000000e+00> : vector<2x64xf32>
      %27 = tpu.matmul %arg16, %15, %cst_31 {dimension_numbers = #tpu.dot_dimension_numbers<[1], [0], [0], [1], [0, 0, 1, 1], [], []>} : vector<2x16xf32>, vector<16x64xf32>, vector<2x64xf32> -> vector<2x64xf32>
      %28 = arith.addf %26, %27 : vector<2x64xf32>
      %c0_32 = arith.constant 0 : index
      %29 = arith.index_cast %23 : i32 to index
      %c0_33 = arith.constant 0 : index
      %30 = vector.load %arg14[%c0_32, %29, %c0_33] : memref<2x8x64xf32, #tpu.memory_space<vmem>>, vector<2x1x64xf32>
      %31 = vector.shape_cast %30 : vector<2x1x64xf32> to vector<2x64xf32>
      %cst_34 = arith.constant dense<0.000000e+00> : vector<2x64xf32>
      %32 = tpu.matmul %arg18, %16, %cst_34 {dimension_numbers = #tpu.dot_dimension_numbers<[1], [0], [0], [1], [0, 0, 1, 1], [], []>} : vector<2x16xf32>, vector<16x64xf32>, vector<2x64xf32> -> vector<2x64xf32>
      %33 = arith.addf %31, %32 : vector<2x64xf32>
      %34 = vector.extract_strided_slice %28 {offsets = [0, 0], sizes = [2, 16], strides = [1, 1]} : vector<2x64xf32> to vector<2x16xf32>
      %35 = arith.negf %34 : vector<2x16xf32>
      %36 = math.exp %35 : vector<2x16xf32>
      %cst_35 = arith.constant 1.000000e+00 : f32
      %37 = vector.broadcast %cst_35 : f32 to vector<2x16xf32>
      %38 = arith.addf %37, %36 : vector<2x16xf32>
      %39 = arith.divf %37, %38 : vector<2x16xf32>
      %40 = vector.extract_strided_slice %28 {offsets = [0, 16], sizes = [2, 16], strides = [1, 1]} : vector<2x64xf32> to vector<2x16xf32>
      %41 = arith.negf %40 : vector<2x16xf32>
      %42 = math.exp %41 : vector<2x16xf32>
      %cst_36 = arith.constant 1.000000e+00 : f32
      %43 = vector.broadcast %cst_36 : f32 to vector<2x16xf32>
      %44 = arith.addf %43, %42 : vector<2x16xf32>
      %45 = arith.divf %43, %44 : vector<2x16xf32>
      %46 = vector.extract_strided_slice %28 {offsets = [0, 32], sizes = [2, 16], strides = [1, 1]} : vector<2x64xf32> to vector<2x16xf32>
      %47 = math.tanh %46 : vector<2x16xf32>
      %48 = vector.extract_strided_slice %28 {offsets = [0, 48], sizes = [2, 16], strides = [1, 1]} : vector<2x64xf32> to vector<2x16xf32>
      %49 = arith.negf %48 : vector<2x16xf32>
      %50 = math.exp %49 : vector<2x16xf32>
      %cst_37 = arith.constant 1.000000e+00 : f32
      %51 = vector.broadcast %cst_37 : f32 to vector<2x16xf32>
      %52 = arith.addf %51, %50 : vector<2x16xf32>
      %53 = arith.divf %51, %52 : vector<2x16xf32>
      %54 = arith.mulf %45, %arg17 : vector<2x16xf32>
      %55 = arith.mulf %39, %47 : vector<2x16xf32>
      %56 = arith.addf %54, %55 : vector<2x16xf32>
      %57 = math.tanh %56 : vector<2x16xf32>
      %58 = arith.mulf %53, %57 : vector<2x16xf32>
      %59 = vector.extract_strided_slice %33 {offsets = [0, 0], sizes = [2, 16], strides = [1, 1]} : vector<2x64xf32> to vector<2x16xf32>
      %60 = arith.negf %59 : vector<2x16xf32>
      %61 = math.exp %60 : vector<2x16xf32>
      %cst_38 = arith.constant 1.000000e+00 : f32
      %62 = vector.broadcast %cst_38 : f32 to vector<2x16xf32>
      %63 = arith.addf %62, %61 : vector<2x16xf32>
      %64 = arith.divf %62, %63 : vector<2x16xf32>
      %65 = vector.extract_strided_slice %33 {offsets = [0, 16], sizes = [2, 16], strides = [1, 1]} : vector<2x64xf32> to vector<2x16xf32>
      %66 = arith.negf %65 : vector<2x16xf32>
      %67 = math.exp %66 : vector<2x16xf32>
      %cst_39 = arith.constant 1.000000e+00 : f32
      %68 = vector.broadcast %cst_39 : f32 to vector<2x16xf32>
      %69 = arith.addf %68, %67 : vector<2x16xf32>
      %70 = arith.divf %68, %69 : vector<2x16xf32>
      %71 = vector.extract_strided_slice %33 {offsets = [0, 32], sizes = [2, 16], strides = [1, 1]} : vector<2x64xf32> to vector<2x16xf32>
      %72 = math.tanh %71 : vector<2x16xf32>
      %73 = vector.extract_strided_slice %33 {offsets = [0, 48], sizes = [2, 16], strides = [1, 1]} : vector<2x64xf32> to vector<2x16xf32>
      %74 = arith.negf %73 : vector<2x16xf32>
      %75 = math.exp %74 : vector<2x16xf32>
      %cst_40 = arith.constant 1.000000e+00 : f32
      %76 = vector.broadcast %cst_40 : f32 to vector<2x16xf32>
      %77 = arith.addf %76, %75 : vector<2x16xf32>
      %78 = arith.divf %76, %77 : vector<2x16xf32>
      %79 = arith.mulf %70, %arg19 : vector<2x16xf32>
      %80 = arith.mulf %64, %72 : vector<2x16xf32>
      %81 = arith.addf %79, %80 : vector<2x16xf32>
      %82 = math.tanh %81 : vector<2x16xf32>
      %83 = arith.mulf %78, %82 : vector<2x16xf32>
      %84 = vector.shape_cast %58 : vector<2x16xf32> to vector<2x1x16xf32>
      %c0_41 = arith.constant 0 : index
      %85 = arith.index_cast %arg15 : i32 to index
      %c0_42 = arith.constant 0 : index
      %86 = vector.load %arg12[%c0_41, %85, %c0_42] : memref<2x8x32xf32, #tpu.memory_space<vmem>>, vector<2x1x16xf32>
      tpu.vector_store %arg12[%c0_41, %85, %c0_42], %84 {strides = array<i32>} : memref<2x8x32xf32, #tpu.memory_space<vmem>>, vector<2x1x16xf32>,
      %87 = vector.shape_cast %83 : vector<2x16xf32> to vector<2x1x16xf32>
      %c0_43 = arith.constant 0 : index
      %88 = arith.index_cast %23 : i32 to index
      %c16 = arith.constant 16 : index
      %89 = vector.load %arg12[%c0_43, %88, %c16] : memref<2x8x32xf32, #tpu.memory_space<vmem>>, vector<2x1x16xf32>
      tpu.vector_store %arg12[%c0_43, %88, %c16], %87 {strides = array<i32>} : memref<2x8x32xf32, #tpu.memory_space<vmem>>, vector<2x1x16xf32>,
      scf.yield %58, %56, %83, %81 : vector<2x16xf32>, vector<2x16xf32>, vector<2x16xf32>, vector<2x16xf32>
    }
    %c8_i32_28 = arith.constant 8 : i32
    return
  }
  func.func @transform_0(%arg0: i32) -> (i32, i32) {
    %c0_i32 = arith.constant 0 : i32
    %c0_i32_0 = arith.constant 0 : i32
    %c0_i32_1 = arith.constant 0 : i32
    return %c0_i32, %c0_i32_0 : i32, i32
  }
  func.func @transform_1(%arg0: i32) -> (i32, i32) {
    %c0_i32 = arith.constant 0 : i32
    %c0_i32_0 = arith.constant 0 : i32
    %c0_i32_1 = arith.constant 0 : i32
    return %c0_i32, %c0_i32_0 : i32, i32
  }
  func.func @transform_2(%arg0: i32) -> (i32, i32) {
    %c0_i32 = arith.constant 0 : i32
    %c0_i32_0 = arith.constant 0 : i32
    %c0_i32_1 = arith.constant 0 : i32
    return %c0_i32, %c0_i32_0 : i32, i32
  }
  func.func @transform_3(%arg0: i32) -> (i32, i32) {
    %c0_i32 = arith.constant 0 : i32
    %c0_i32_0 = arith.constant 0 : i32
    %c0_i32_1 = arith.constant 0 : i32
    return %c0_i32, %c0_i32_0 : i32, i32
  }
  func.func @transform_4(%arg0: i32) -> (i32, i32) {
    %c0_i32 = arith.constant 0 : i32
    %c0_i32_0 = arith.constant 0 : i32
    %c0_i32_1 = arith.constant 0 : i32
    return %c0_i32, %c0_i32_0 : i32, i32
  }
  func.func @transform_5(%arg0: i32) -> (i32, i32) {
    %c0_i32 = arith.constant 0 : i32
    %c0_i32_0 = arith.constant 0 : i32
    %c0_i32_1 = arith.constant 0 : i32
    return %c0_i32, %c0_i32_0 : i32, i32
  }
  func.func @transform_6(%arg0: i32) -> (i32, i32) {
    %c0_i32 = arith.constant 0 : i32
    %c0_i32_0 = arith.constant 0 : i32
    %c0_i32_1 = arith.constant 0 : i32
    return %c0_i32, %c0_i32_0 : i32, i32
  }
  func.func @transform_7(%arg0: i32) -> (i32, i32) {
    %c0_i32 = arith.constant 0 : i32
    %c0_i32_0 = arith.constant 0 : i32
    %c0_i32_1 = arith.constant 0 : i32
    return %c0_i32, %c0_i32_0 : i32, i32
  }
  func.func @transform_8(%arg0: i32) -> (i32, i32) {
    %c0_i32 = arith.constant 0 : i32
    %c0_i32_0 = arith.constant 0 : i32
    %c0_i32_1 = arith.constant 0 : i32
    return %c0_i32, %c0_i32_0 : i32, i32
  }
  func.func @transform_9(%arg0: i32) -> (i32, i32) {
    %c0_i32 = arith.constant 0 : i32
    %c0_i32_0 = arith.constant 0 : i32
    %c0_i32_1 = arith.constant 0 : i32
    return %c0_i32, %c0_i32_0 : i32, i32
  }
  func.func @transform_10(%arg0: i32) -> (i32, i32) {
    %c0_i32 = arith.constant 0 : i32
    %c0_i32_0 = arith.constant 0 : i32
    %c0_i32_1 = arith.constant 0 : i32
    return %c0_i32, %c0_i32_0 : i32, i32
  }
  func.func @transform_11(%arg0: i32) -> (i32, i32, i32) {
    %c0_i32 = arith.constant 0 : i32
    %c0_i32_0 = arith.constant 0 : i32
    %c0_i32_1 = arith.constant 0 : i32
    %c0_i32_2 = arith.constant 0 : i32
    return %c0_i32, %c0_i32_0, %c0_i32_1 : i32, i32, i32
  }
}

</mosaic_0001>

<llo_original>
// kernel: tpu_custom_call.1
$region0: #{tpu_custom_call.1}
  #allocation0 [shape = 'u32[]', space=smem, size = 0x4, offset = 0x4, fixed_abs, tag = 'smem constant byte address 0x4 - core index']
  #allocation1 [shape = 'u32[72,128]{1,0:T(1,128)}', space=vmem, size = 0x9000, scoped, tag = 'internal scratch']
  #allocation2 [shape = 'f32[2,8,64]{2,1,0:T(8,128)}', space=vmem, size = 0x2000, scoped, tag = 'scratch operand']
  #allocation3 [shape = 'f32[2,8,64]{2,1,0:T(8,128)}', space=vmem, size = 0x2000, scoped, tag = 'scratch operand']
  %s0 = inlined_call_operand.hbm [shape: f32[16,32], index: 0, kind: input, shape index: {}]
  %s1 = inlined_call_operand.hbm [shape: f32[32,64], index: 1, kind: input, shape index: {}]
  %s2 = inlined_call_operand.hbm [shape: f32[32,64], index: 2, kind: input, shape index: {}]
  %s3 = inlined_call_operand.hbm [shape: f32[1,64], index: 3, kind: input, shape index: {}]
  %s4 = inlined_call_operand.hbm [shape: f32[1,64], index: 4, kind: input, shape index: {}]
  %s5 = inlined_call_operand.hbm [shape: f32[16,64], index: 5, kind: input, shape index: {}]
  %s6 = inlined_call_operand.hbm [shape: f32[16,64], index: 6, kind: input, shape index: {}]
  %s7 = inlined_call_operand.vmem [shape: f32[2,16], index: 7, kind: input, shape index: {}]
  %s8 = inlined_call_operand.vmem [shape: f32[2,16], index: 8, kind: input, shape index: {}]
  %s9 = inlined_call_operand.vmem [shape: f32[2,16], index: 9, kind: input, shape index: {}]
  %s10 = inlined_call_operand.vmem [shape: f32[2,16], index: 10, kind: input, shape index: {}]
  %s11 = inlined_call_operand.hbm [shape: f32[2,8,32], index: 11, kind: output, shape index: {}]
  %s12 = sld [smem:[#allocation0]]
  $region89: #{tpu_custom_call.1} parent=0
    _
  %s14 = ssub.s32 1, %s12
  %s15 = scalar_select 0, %s14, %s12
  $region1: #{tpu_custom_call.1} parent=0
    #allocation4 [shape = 'u8[8192]{0}', space=vmem, size = 0x2000, scoped, tag = 'input window, operand 0, single buffered']
    #allocation5 [shape = 's32[1]{0}', space=sflag, size = 0x4, scoped, tag = 'scoped memory for tpu_custom_call.1']
    #allocation6 [shape = 's32[1]{0}', space=sflag, size = 0x4, scoped, tag = 'scoped memory for tpu_custom_call.1']
    #allocation7 [shape = 'u8[16384]{0}', space=vmem, size = 0x4000, scoped, tag = 'input window, operand 1, single buffered']
    #allocation8 [shape = 's32[1]{0}', space=sflag, size = 0x4, scoped, tag = 'scoped memory for tpu_custom_call.1']
    #allocation9 [shape = 'u8[16384]{0}', space=vmem, size = 0x4000, scoped, tag = 'input window, operand 2, single buffered']
    #allocation10 [shape = 'u8[512]{0}', space=vmem, size = 0x400, scoped, tag = 'input window, operand 3, single buffered']
    #allocation11 [shape = 's32[1]{0}', space=sflag, size = 0x4, scoped, tag = 'scoped memory for tpu_custom_call.1']
    #allocation12 [shape = 'u8[512]{0}', space=vmem, size = 0x400, scoped, tag = 'input window, operand 4, single buffered']
    #allocation13 [shape = 'u8[8192]{0}', space=vmem, size = 0x2000, scoped, tag = 'input window, operand 5, single buffered']
    #allocation14 [shape = 's32[1]{0}', space=sflag, size = 0x4, scoped, tag = 'scoped memory for tpu_custom_call.1']
    #allocation15 [shape = 'u8[8192]{0}', space=vmem, size = 0x2000, scoped, tag = 'input window, operand 6, single buffered']
    #allocation16 [shape = 'u8[8192]{0}', space=vmem, size = 0x2000, scoped, tag = 'output window, operand 0, single buffered']
    %16 = vsyncpa [#allocation5], 0
    %17 = vsyncpa [#allocation8], 0
    %18 = vsyncpa [#allocation11], 0
    %19 = vsyncpa [#allocation14], 0
    %20 = vsyncpa [#allocation6], 0
    // Predicated region
    $region2: #{tpu_custom_call.1} parent=1 // pred_check
      _
    $region3: #{tpu_custom_call.1} parent=1 // pred_check_branch
      %22 = sbr.rel (0) target = $region5
    $region4: #{tpu_custom_call.1} parent=1 // pred_region
      %24 = vsyncadd [#allocation5], 0
      %s25 = sshll.u32 %s0, 4
      %s26 = int_to_ptr.hbm [resolvable:$true] %s25
      %s27 = sshll.u32 [#allocation4], 4
      %s28 = int_to_ptr.vmem [resolvable:$true] %s27
      %33 = dma.hbm_to_vmem [thread:$0]  %s26, 256, %s28, [#allocation5], 128, 128, 8
    $region5: #{tpu_custom_call.1} parent=1 // pred_fallthru
      _
    // Predicated region
    $region6: #{tpu_custom_call.1} parent=1 // pred_check
      _
    $region7: #{tpu_custom_call.1} parent=1 // pred_check_branch
      %35 = sbr.rel (0) target = $region9
    $region8: #{tpu_custom_call.1} parent=1 // pred_region
      %37 = vsyncadd [#allocation8], 0
      %s38 = sshll.u32 %s1, 4
      %s39 = int_to_ptr.hbm [resolvable:$true] %s38
      %s40 = sshll.u32 [#allocation7], 4
      %s41 = int_to_ptr.vmem [resolvable:$true] %s40
      %46 = dma.hbm_to_vmem [thread:$0]  %s39, 512, %s41, [#allocation8], 128, 128, 8
    $region9: #{tpu_custom_call.1} parent=1 // pred_fallthru
      _
    // Predicated region
    $region10: #{tpu_custom_call.1} parent=1 // pred_check
      _
    $region11: #{tpu_custom_call.1} parent=1 // pred_check_branch
      %48 = sbr.rel (0) target = $region13
    $region12: #{tpu_custom_call.1} parent=1 // pred_region
      %50 = vsyncadd [#allocation8], 0
      %s51 = sshll.u32 %s2, 4
      %s52 = int_to_ptr.hbm [resolvable:$true] %s51
      %s53 = sshll.u32 [#allocation9], 4
      %s54 = int_to_ptr.vmem [resolvable:$true] %s53
      %59 = dma.hbm_to_vmem [thread:$0]  %s52, 512, %s54, [#allocation8], 128, 128, 8
    $region13: #{tpu_custom_call.1} parent=1 // pred_fallthru
      _
    // Predicated region
    $region14: #{tpu_custom_call.1} parent=1 // pred_check
      _
    $region15: #{tpu_custom_call.1} parent=1 // pred_check_branch
      %61 = sbr.rel (0) target = $region17
    $region16: #{tpu_custom_call.1} parent=1 // pred_region
      %63 = vsyncadd [#allocation11], 0
      %s65 = sshll.u32 %s3, 4
      %s66 = int_to_ptr.hbm [resolvable:$true] %s65
      %s67 = sshll.u32 [#allocation10], 4
      %s68 = int_to_ptr.vmem [resolvable:$true] %s67
      %70 = dma.hbm_to_vmem [thread:$0]  %s66, 16, %s68, [#allocation11]
    $region17: #{tpu_custom_call.1} parent=1 // pred_fallthru
      _
    // Predicated region
    $region18: #{tpu_custom_call.1} parent=1 // pred_check
      _
    $region19: #{tpu_custom_call.1} parent=1 // pred_check_branch
      %72 = sbr.rel (0) target = $region21
    $region20: #{tpu_custom_call.1} parent=1 // pred_region
      %74 = vsyncadd [#allocation11], 0
      %s76 = sshll.u32 %s4, 4
      %s77 = int_to_ptr.hbm [resolvable:$true] %s76
      %s78 = sshll.u32 [#allocation12], 4
      %s79 = int_to_ptr.vmem [resolvable:$true] %s78
      %81 = dma.hbm_to_vmem [thread:$0]  %s77, 16, %s79, [#allocation11]
    $region21: #{tpu_custom_call.1} parent=1 // pred_fallthru
      _
    // Predicated region
    $region22: #{tpu_custom_call.1} parent=1 // pred_check
      _
    $region23: #{tpu_custom_call.1} parent=1 // pred_check_branch
      %83 = sbr.rel (0) target = $region25
    $region24: #{tpu_custom_call.1} parent=1 // pred_region
      %85 = vsyncadd [#allocation14], 0
      %s86 = sshll.u32 %s5, 4
      %s87 = int_to_ptr.hbm [resolvable:$true] %s86
      %s88 = sshll.u32 [#allocation13], 4
      %s89 = int_to_ptr.vmem [resolvable:$true] %s88
      %94 = dma.hbm_to_vmem [thread:$0]  %s87, 256, %s89, [#allocation14], 128, 128, 8
    $region25: #{tpu_custom_call.1} parent=1 // pred_fallthru
      _
    // Predicated region
    $region26: #{tpu_custom_call.1} parent=1 // pred_check
      _
    $region27: #{tpu_custom_call.1} parent=1 // pred_check_branch
      %96 = sbr.rel (0) target = $region29
    $region28: #{tpu_custom_call.1} parent=1 // pred_region
      %98 = vsyncadd [#allocation14], 0
      %s99 = sshll.u32 %s6, 4
      %s100 = int_to_ptr.hbm [resolvable:$true] %s99
      %s101 = sshll.u32 [#allocation15], 4
      %s102 = int_to_ptr.vmem [resolvable:$true] %s101
      %107 = dma.hbm_to_vmem [thread:$0]  %s100, 256, %s102, [#allocation14], 128, 128, 8
    $region29: #{tpu_custom_call.1} parent=1 // pred_fallthru
      _
    // Predicated region
    $region30: #{tpu_custom_call.1} parent=1 // pred_check
      _
    $region31: #{tpu_custom_call.1} parent=1 // pred_check_branch
      %109 = sbr.rel (0) target = $region33
    $region32: #{tpu_custom_call.1} parent=1 // pred_region
      _
    $region33: #{tpu_custom_call.1} parent=1 // pred_fallthru
      _
    // Predicated region
    $region34: #{tpu_custom_call.1} parent=1 // pred_check
      _
    $region35: #{tpu_custom_call.1} parent=1 // pred_check_branch
      %111 = sbr.rel (0) target = $region37
    $region36: #{tpu_custom_call.1} parent=1 // pred_region
      _
    $region37: #{tpu_custom_call.1} parent=1 // pred_fallthru
      _
    // Predicated region
    $region38: #{tpu_custom_call.1} parent=1 // pred_check
      _
    $region39: #{tpu_custom_call.1} parent=1 // pred_check_branch
      %113 = sbr.rel (0) target = $region41
    $region40: #{tpu_custom_call.1} parent=1 // pred_region
      _
    $region41: #{tpu_custom_call.1} parent=1 // pred_fallthru
      _
    // Predicated region
    $region42: #{tpu_custom_call.1} parent=1 // pred_check
      _
    $region43: #{tpu_custom_call.1} parent=1 // pred_check_branch
      %115 = sbr.rel (0) target = $region45
    $region44: #{tpu_custom_call.1} parent=1 // pred_region
      _
    $region45: #{tpu_custom_call.1} parent=1 // pred_fallthru
      _
    // Predicated region
    $region46: #{tpu_custom_call.1} parent=1 // pred_check
      _
    $region47: #{tpu_custom_call.1} parent=1 // pred_check_branch
      %117 = sbr.rel (0) target = $region49
    $region48: #{tpu_custom_call.1} parent=1 // pred_region
      %119 = dma.done [#allocation5], 256
    $region49: #{tpu_custom_call.1} parent=1 // pred_fallthru
      _
    // Predicated region
    $region50: #{tpu_custom_call.1} parent=1 // pred_check
      _
    $region51: #{tpu_custom_call.1} parent=1 // pred_check_branch
      %121 = sbr.rel (0) target = $region53
    $region52: #{tpu_custom_call.1} parent=1 // pred_region
      %123 = dma.done [#allocation8], 512
    $region53: #{tpu_custom_call.1} parent=1 // pred_fallthru
      _
    // Predicated region
    $region54: #{tpu_custom_call.1} parent=1 // pred_check
      _
    $region55: #{tpu_custom_call.1} parent=1 // pred_check_branch
      %125 = sbr.rel (0) target = $region57
    $region56: #{tpu_custom_call.1} parent=1 // pred_region
      %127 = dma.done [#allocation8], 512
    $region57: #{tpu_custom_call.1} parent=1 // pred_fallthru
      _
    // Predicated region
    $region58: #{tpu_custom_call.1} parent=1 // pred_check
      _
    $region59: #{tpu_custom_call.1} parent=1 // pred_check_branch
      %129 = sbr.rel (0) target = $region61
    $region60: #{tpu_custom_call.1} parent=1 // pred_region
      %131 = dma.done [#allocation11], 16
    $region61: #{tpu_custom_call.1} parent=1 // pred_fallthru
      _
    // Predicated region
    $region62: #{tpu_custom_call.1} parent=1 // pred_check
      _
    $region63: #{tpu_custom_call.1} parent=1 // pred_check_branch
      %133 = sbr.rel (0) target = $region65
    $region64: #{tpu_custom_call.1} parent=1 // pred_region
      %135 = dma.done [#allocation11], 16
    $region65: #{tpu_custom_call.1} parent=1 // pred_fallthru
      _
    // Predicated region
    $region66: #{tpu_custom_call.1} parent=1 // pred_check
      _
    $region67: #{tpu_custom_call.1} parent=1 // pred_check_branch
      %137 = sbr.rel (0) target = $region69
    $region68: #{tpu_custom_call.1} parent=1 // pred_region
      %139 = dma.done [#allocation14], 256
    $region69: #{tpu_custom_call.1} parent=1 // pred_fallthru
      _
    // Predicated region
    $region70: #{tpu_custom_call.1} parent=1 // pred_check
      _
    $region71: #{tpu_custom_call.1} parent=1 // pred_check_branch
      %141 = sbr.rel (0) target = $region73
    $region72: #{tpu_custom_call.1} parent=1 // pred_region
      %143 = dma.done [#allocation14], 256
    $region73: #{tpu_custom_call.1} parent=1 // pred_fallthru
      _
    %v144 = vld [vmem:[#allocation4] sm:$0xff]
    %v145 = vld [vmem:[#allocation4 + $0x8] sm:$0xff]
    %v146 = vld [vmem:[#allocation7] sm:$0xff]
    %v147 = vld [vmem:[#allocation7 + $0x8] sm:$0xff]
    %v148 = vld [vmem:[#allocation7 + $0x10] sm:$0xff]
    %v149 = vld [vmem:[#allocation7 + $0x18] sm:$0xff]
    %v150 = vld [vmem:[#allocation10] sm:$0x1]
    %v152 = vperm.slane %v150, 0
    %vm154 = vcmask 261120
    %v156 = vsel %vm154, %v144, 0
    %v159 = vsel %vm154, %v145, 0
    %161 = vmatpush.msra.mxu0 0.0
    %162 = vmatpush.msra.mxu0 0.0
    %163 = vmatpush.msra.mxu0 0.0
    %164 = vmatpush.msra.mxu0 0.0
    %165 = vmatpush.msra.mxu0 0.0
    %166 = vmatpush.msra.mxu0 0.0
    %167 = vmatpush.msra.mxu0 0.0
    %168 = vmatpush.msra.mxu0 0.0
    %169 = vmatpush.msra.mxu0 0.0
    %170 = vmatpush.msra.mxu0 0.0
    %171 = vmatpush.msra.mxu0 0.0
    %172 = vmatpush.msra.mxu0 0.0
    %173 = vmatpush.msra.mxu0 %v149
    %174 = vmatpush.msra.mxu0 %v148
    %175 = vmatpush.msra.mxu0 %v147
    %176 = vmatpush.msra.mxu0 %v146
    %177 = vmatmul.f32.gmra.mxu0 %v156
    %v178 = vpop.f32.mrf.mxu0
    %v179 = vadd.f32 %v152, %v178
    %180 = vmatmul.f32.gmra.mxu0 %v159
    %v181 = vpop.f32.mrf.mxu0
    %v182 = vadd.f32 %v152, %v181
    %183 = vdwg.mxu0
    %vm184 = vcmask 523264
    %185 = vst.msk [vmem:[#allocation2] sm:$0xff] %vm184, %v179
    %186 = vst.msk [vmem:[#allocation2 + $0x8] sm:$0xff] %vm184, %v182
    %v187 = vld [vmem:[#allocation9] sm:$0xff]
    %v188 = vld [vmem:[#allocation9 + $0x8] sm:$0xff]
    %v189 = vld [vmem:[#allocation9 + $0x10] sm:$0xff]
    %v190 = vld [vmem:[#allocation9 + $0x18] sm:$0xff]
    %v191 = vld [vmem:[#allocation12] sm:$0x1]
    %v193 = vperm.slane %v191, 0
    %195 = vmatpush.msra.mxu0 0.0
    %196 = vmatpush.msra.mxu0 0.0
    %197 = vmatpush.msra.mxu0 0.0
    %198 = vmatpush.msra.mxu0 0.0
    %199 = vmatpush.msra.mxu0 0.0
    %200 = vmatpush.msra.mxu0 0.0
    %201 = vmatpush.msra.mxu0 0.0
    %202 = vmatpush.msra.mxu0 0.0
    %203 = vmatpush.msra.mxu0 0.0
    %204 = vmatpush.msra.mxu0 0.0
    %205 = vmatpush.msra.mxu0 0.0
    %206 = vmatpush.msra.mxu0 0.0
    %207 = vmatpush.msra.mxu0 %v190
    %208 = vmatpush.msra.mxu0 %v189
    %209 = vmatpush.msra.mxu0 %v188
    %210 = vmatpush.msra.mxu0 %v187
    %211 = vmatmul.f32.gmra.mxu0 %v156
    %v212 = vpop.f32.mrf.mxu0
    %v213 = vadd.f32 %v193, %v212
    %214 = vmatmul.f32.gmra.mxu0 %v159
    %v215 = vpop.f32.mrf.mxu0
    %v216 = vadd.f32 %v193, %v215
    %217 = vdwg.mxu0
    %218 = vst.msk [vmem:[#allocation3] sm:$0xff] %vm184, %v213
    %219 = vst.msk [vmem:[#allocation3 + $0x8] sm:$0xff] %vm184, %v216
    %v220 = vld [vmem:[#allocation13] sm:$0xff]
    %v221 = vld [vmem:[#allocation13 + $0x8] sm:$0xff]
    %v222 = vld [vmem:[#allocation15] sm:$0xff]
    %v223 = vld [vmem:[#allocation15 + $0x8] sm:$0xff]
    %v224 = vld [vmem:[%s7] sm:$0x3]
    %v225 = vld [vmem:[%s8] sm:$0x3]
    %v226 = vld [vmem:[%s9] sm:$0x3]
    %v227 = vld [vmem:[%s10] sm:$0x3]
    loop: start=0, step=1, limit=8
    $region74: #{tpu_custom_call.1} parent=1 // loop_pre_header
      _
    $region75: #{tpu_custom_call.1} parent=1 // loop_header
      %s229 = sphi 0, %s233
      %p230 = scmp.ge.s32.totalorder %s229, 8
      %v234 = vphi %v224, %v496
      %v235 = vphi %v225, %v503
      %v236 = vphi %v226, %v508
      %v237 = vphi %v227, %v515
    $region76: #{tpu_custom_call.1} parent=1 // loop_header_branch
      %232 = sbr.rel (%p230) target = $region80
    $region77: #{tpu_custom_call.1} parent=1 // loop_body
      %s238 = ssub.s32 7, %s229
      %s239 = scalar_lea.vmem [#allocation2], %s229
      %v240 = vld [vmem:[%s239] sm:$0x1]
      %v241 = vld [vmem:[%s239 + $0x8] sm:$0x1]
      %vm242 = vcmask 130048
      %v244 = vsel %vm242, %v234, 0
      %246 = vmatpush.msra.mxu0 0.0
      %247 = vmatpush.msra.mxu0 0.0
      %248 = vmatpush.msra.mxu0 0.0
      %249 = vmatpush.msra.mxu0 0.0
      %250 = vmatpush.msra.mxu0 0.0
      %251 = vmatpush.msra.mxu0 0.0
      %252 = vmatpush.msra.mxu0 0.0
      %253 = vmatpush.msra.mxu0 0.0
      %254 = vmatpush.msra.mxu0 0.0
      %255 = vmatpush.msra.mxu0 0.0
      %256 = vmatpush.msra.mxu0 0.0
      %257 = vmatpush.msra.mxu0 0.0
      %258 = vmatpush.msra.mxu0 0.0
      %259 = vmatpush.msra.mxu0 0.0
      %260 = vmatpush.msra.mxu0 %v221
      %261 = vmatpush.msra.mxu0 %v220
      %262 = vmatmul.f32.gmra.mxu0 %v244
      %v263 = vpop.f32.mrf.mxu0
      %v264 = vadd.f32 0.0, %v263
      %265 = vdwg.mxu0
      %v267 = vrot.slane %v264, 1
      %v270 = vadd.f32 %v240, %v264
      %v271 = vadd.f32 %v241, %v267
      %s272 = scalar_lea.vmem [#allocation3], %s238
      %v273 = vld [vmem:[%s272] sm:$0x1]
      %v274 = vld [vmem:[%s272 + $0x8] sm:$0x1]
      %v276 = vsel %vm242, %v236, 0
      %278 = vmatpush.msra.mxu0 0.0
      %279 = vmatpush.msra.mxu0 0.0
      %280 = vmatpush.msra.mxu0 0.0
      %281 = vmatpush.msra.mxu0 0.0
      %282 = vmatpush.msra.mxu0 0.0
      %283 = vmatpush.msra.mxu0 0.0
      %284 = vmatpush.msra.mxu0 0.0
      %285 = vmatpush.msra.mxu0 0.0
      %286 = vmatpush.msra.mxu0 0.0
      %287 = vmatpush.msra.mxu0 0.0
      %288 = vmatpush.msra.mxu0 0.0
      %289 = vmatpush.msra.mxu0 0.0
      %290 = vmatpush.msra.mxu0 0.0
      %291 = vmatpush.msra.mxu0 0.0
      %292 = vmatpush.msra.mxu0 %v223
      %293 = vmatpush.msra.mxu0 %v222
      %294 = vmatmul.f32.gmra.mxu0 %v276
      %v295 = vpop.f32.mrf.mxu0
      %v296 = vadd.f32 0.0, %v295
      %297 = vdwg.mxu0
      %v299 = vrot.slane %v296, 1
      %v302 = vadd.f32 %v273, %v296
      %v303 = vadd.f32 %v274, %v299
      %v304 = vxor.u32 %v270, 2147483648
      %v305 = vxor.u32 %v271, 2147483648
      %v306 = vmul.f32 %v304, 1.442695
      %v307 = vpow.pop %v306
      %v308 = vmul.f32 %v305, 1.442695
      %v309 = vpow.pop %v308
      %v310 = vadd.f32 %v307, 1.0
      %v311 = vadd.f32 %v309, 1.0
      %v312 = vrcp.pop %v310
      %v313 = vmul.f32 %v310, %v312
      %v314 = vsub.f32 1.0, %v313
      %v315 = vmul.f32 %v312, %v314
      %v316 = vadd.f32 %v312, %v315
      %vm317 = vweird.f32 %v310
      %vm318 = vweird.f32 %v312
      %vm319 = vmor %vm317, %vm318
      %v320 = vsel %vm319, %v312, %v316
      %v321 = vand.u32 2147483647, %v310
      %vm322 = vcmp.eq.f32.partialorder %v321, 8.507059e+37
      %v323 = vand.u32 %v310, 2147483648
      %v324 = vor.u32 1.1754944e-38, %v323
      %v325 = vsel %vm322, %v324, %v320
      %v326 = vmul.f32 1.0, %v325
      %v327 = vrcp.pop %v311
      %v328 = vmul.f32 %v311, %v327
      %v329 = vsub.f32 1.0, %v328
      %v330 = vmul.f32 %v327, %v329
      %v331 = vadd.f32 %v327, %v330
      %vm332 = vweird.f32 %v311
      %vm333 = vweird.f32 %v327
      %vm334 = vmor %vm332, %vm333
      %v335 = vsel %vm334, %v327, %v331
      %v336 = vand.u32 2147483647, %v311
      %vm337 = vcmp.eq.f32.partialorder %v336, 8.507059e+37
      %v338 = vand.u32 %v311, 2147483648
      %v339 = vor.u32 1.1754944e-38, %v338
      %v340 = vsel %vm337, %v339, %v335
      %v341 = vmul.f32 1.0, %v340
      %v342 = vtanh.pop %v270
      %v343 = vtanh.pop %v271
      %v345 = vrot.slane %v235, 1
      %346 = vrot.lane.b32.xlu0 %v235, 16
      %v347 = vpop.permute.xlu0 %346
      %348 = vrot.lane.b32.xlu0 %v345, 16
      %v349 = vpop.permute.xlu0 %348
      %v352 = vmul.f32 %v326, %v347
      %v353 = vmul.f32 %v341, %v349
      %356 = vrot.lane.b32.xlu0 %v342, 96
      %v357 = vpop.permute.xlu0 %356
      %358 = vrot.lane.b32.xlu0 %v343, 96
      %v359 = vpop.permute.xlu0 %358
      %v362 = vmul.f32 %v326, %v357
      %v363 = vmul.f32 %v341, %v359
      %366 = vrot.lane.b32.xlu0 %v362, 16
      %v367 = vpop.permute.xlu0 %366
      %368 = vrot.lane.b32.xlu0 %v363, 16
      %v369 = vpop.permute.xlu0 %368
      %v372 = vadd.f32 %v352, %v367
      %v373 = vadd.f32 %v353, %v369
      %v374 = vtanh.pop %v372
      %v375 = vtanh.pop %v373
      %378 = vrot.lane.b32.xlu0 %v374, 32
      %v379 = vpop.permute.xlu0 %378
      %380 = vrot.lane.b32.xlu0 %v375, 32
      %v381 = vpop.permute.xlu0 %380
      %v384 = vmul.f32 %v326, %v379
      %v385 = vmul.f32 %v341, %v381
      %v386 = vxor.u32 %v302, 2147483648
      %v387 = vxor.u32 %v303, 2147483648
      %v388 = vmul.f32 %v386, 1.442695
      %v389 = vpow.pop %v388
      %v390 = vmul.f32 %v387, 1.442695
      %v391 = vpow.pop %v390
      %v392 = vadd.f32 %v389, 1.0
      %v393 = vadd.f32 %v391, 1.0
      %v394 = vrcp.pop %v392
      %v395 = vmul.f32 %v392, %v394
      %v396 = vsub.f32 1.0, %v395
      %v397 = vmul.f32 %v394, %v396
      %v398 = vadd.f32 %v394, %v397
      %vm399 = vweird.f32 %v392
      %vm400 = vweird.f32 %v394
      %vm401 = vmor %vm399, %vm400
      %v402 = vsel %vm401, %v394, %v398
      %v403 = vand.u32 2147483647, %v392
      %vm404 = vcmp.eq.f32.partialorder %v403, 8.507059e+37
      %v405 = vand.u32 %v392, 2147483648
      %v406 = vor.u32 1.1754944e-38, %v405
      %v407 = vsel %vm404, %v406, %v402
      %v408 = vmul.f32 1.0, %v407
      %v409 = vrcp.pop %v393
      %v410 = vmul.f32 %v393, %v409
      %v411 = vsub.f32 1.0, %v410
      %v412 = vmul.f32 %v409, %v411
      %v413 = vadd.f32 %v409, %v412
      %vm414 = vweird.f32 %v393
      %vm415 = vweird.f32 %v409
      %vm416 = vmor %vm414, %vm415
      %v417 = vsel %vm416, %v409, %v413
      %v418 = vand.u32 2147483647, %v393
      %vm419 = vcmp.eq.f32.partialorder %v418, 8.507059e+37
      %v420 = vand.u32 %v393, 2147483648
      %v421 = vor.u32 1.1754944e-38, %v420
      %v422 = vsel %vm419, %v421, %v417
      %v423 = vmul.f32 1.0, %v422
      %v424 = vtanh.pop %v302
      %v425 = vtanh.pop %v303
      %v427 = vrot.slane %v237, 1
      %428 = vrot.lane.b32.xlu0 %v237, 16
      %v429 = vpop.permute.xlu0 %428
      %430 = vrot.lane.b32.xlu0 %v427, 16
      %v431 = vpop.permute.xlu0 %430
      %v434 = vmul.f32 %v408, %v429
      %v435 = vmul.f32 %v423, %v431
      %438 = vrot.lane.b32.xlu0 %v424, 96
      %v439 = vpop.permute.xlu0 %438
      %440 = vrot.lane.b32.xlu0 %v425, 96
      %v441 = vpop.permute.xlu0 %440
      %v444 = vmul.f32 %v408, %v439
      %v445 = vmul.f32 %v423, %v441
      %448 = vrot.lane.b32.xlu0 %v444, 16
      %v449 = vpop.permute.xlu0 %448
      %450 = vrot.lane.b32.xlu0 %v445, 16
      %v451 = vpop.permute.xlu0 %450
      %v454 = vadd.f32 %v434, %v449
      %v455 = vadd.f32 %v435, %v451
      %v456 = vtanh.pop %v454
      %v457 = vtanh.pop %v455
      %460 = vrot.lane.b32.xlu0 %v456, 32
      %v461 = vpop.permute.xlu0 %460
      %462 = vrot.lane.b32.xlu0 %v457, 32
      %v463 = vpop.permute.xlu0 %462
      %v466 = vmul.f32 %v408, %v461
      %v467 = vmul.f32 %v423, %v463
      %470 = vrot.lane.b32.xlu0 %v384, 80
      %v471 = vpop.permute.xlu0 %470
      %472 = vrot.lane.b32.xlu0 %v385, 80
      %v473 = vpop.permute.xlu0 %472
      %s476 = scalar_lea.vmem [#allocation16], %s229
      %vm477 = vcmask 122880
      %478 = vst.msk [vmem:[%s476] sm:$0x1] %vm477, %v471
      %479 = vst.msk [vmem:[%s476 + $0x8] sm:$0x1] %vm477, %v473
      %482 = vrot.lane.b32.xlu0 %v466, 96
      %v483 = vpop.permute.xlu0 %482
      %484 = vrot.lane.b32.xlu0 %v467, 96
      %v485 = vpop.permute.xlu0 %484
      %s488 = scalar_lea.vmem [#allocation16], %s238
      %vm489 = vcmask 254080
      %490 = vst.msk [vmem:[%s488] sm:$0x1] %vm489, %v483
      %491 = vst.msk [vmem:[%s488 + $0x8] sm:$0x1] %vm489, %v485
      %v492 = vrot.slane %v385, 7
      %vm493 = vcmask 1041409
      %v494 = vsel %vm493, %v492, %v384
      %495 = vrot.lane.b32.xlu0 %v494, 80
      %v496 = vpop.permute.xlu0 %495
      %v500 = vrot.slane %v373, 7
      %v501 = vsel %vm493, %v500, %v372
      %502 = vrot.lane.b32.xlu0 %v501, 112
      %v503 = vpop.permute.xlu0 %502
      %v505 = vrot.slane %v467, 7
      %v506 = vsel %vm493, %v505, %v466
      %507 = vrot.lane.b32.xlu0 %v506, 80
      %v508 = vpop.permute.xlu0 %507
      %v512 = vrot.slane %v455, 7
      %v513 = vsel %vm493, %v512, %v454
      %514 = vrot.lane.b32.xlu0 %v513, 112
      %v515 = vpop.permute.xlu0 %514
    $region78: #{tpu_custom_call.1} parent=1 // loop_footer
      %s233 = sadd.s32 1, %s229
    $region79: #{tpu_custom_call.1} parent=1 // loop_footer_branch
      %228 = sbr.rel target = $region75
    $region80: #{tpu_custom_call.1} parent=1 // loop_exit
      _
    // Predicated region
    $region81: #{tpu_custom_call.1} parent=1 // pred_check
      _
    $region82: #{tpu_custom_call.1} parent=1 // pred_check_branch
      %518 = sbr.rel (0) target = $region84
    $region83: #{tpu_custom_call.1} parent=1 // pred_region
      %520 = vsyncadd [#allocation6], 0
      %s521 = sshll.u32 [#allocation16], 4
      %s522 = int_to_ptr.vmem [resolvable:$true] %s521
      %s523 = sshll.u32 %s11, 4
      %s524 = int_to_ptr.hbm [resolvable:$true] %s523
      %529 = dma.vmem_to_hbm [thread:$0]  %s522, 256, %s524, [#allocation6], 128, 128, 8
    $region84: #{tpu_custom_call.1} parent=1 // pred_fallthru
      _
    // Predicated region
    $region85: #{tpu_custom_call.1} parent=1 // pred_check
      _
    $region86: #{tpu_custom_call.1} parent=1 // pred_check_branch
      %531 = sbr.rel (0) target = $region88
    $region87: #{tpu_custom_call.1} parent=1 // pred_region
      %533 = dma.done [#allocation6], 256
    $region88: #{tpu_custom_call.1} parent=1 // pred_fallthru
      _
    %534 = vsyncpa [#allocation5], 1
    %535 = vsyncpa [#allocation8], 1
    %536 = vsyncpa [#allocation11], 1
    %537 = vsyncpa [#allocation14], 1
    %538 = vsyncpa [#allocation6], 1

</llo_original>
